<compile_context>
chip_gen: v7x
topology: tpu7x:2x2x1
jax: 0.10.0
libtpu: 0.0.40
codegen_flags: <defaults>
</compile_context>

<pallas_src>
import functools
import math

import jax
import jax.numpy as jnp
from jax.experimental import pallas as pl
from jax.experimental.pallas import tpu as pltpu


# ---------------------------------------------------------------------------
# Fused kernel: fc1 -> DWConv(3x3, depthwise, pad=1) -> GELU -> fc2 (per image)
# ---------------------------------------------------------------------------
def _mlp_fused_kernel(x_ref, w1_ref, b1_ref, dww_ref, dwb_ref, w2_ref, b2_ref,
                      o_ref, *, H, W):
    x = x_ref[...][0]                                   # (N, C_in), native dtype

    # --- fc1 on the MXU, f32 accumulation -----------------------------------
    h = jnp.dot(x, w1_ref[...], preferred_element_type=jnp.float32)
    h = h + b1_ref[...].astype(jnp.float32)             # (N, C) f32
    C = h.shape[-1]
    hf = h.reshape(H, W, C)                             # channels on lanes (NHWC)

    # --- three W-shifted copies via XLU roll + boundary mask (no jnp.pad) ----
    col = jax.lax.broadcasted_iota(jnp.int32, (1, W, 1), 1)

    def shift_w(dx):
        # out[:, x, :] = hf[:, x + dx, :], zero-filled at the border.
        if dx == 0:
            return hf
        r = pltpu.roll(hf, shift=(-dx) % W, axis=1)
        mask = (col >= -dx) if dx < 0 else (col < W - dx)
        return jnp.where(mask, r, 0.0)

    xw = (shift_w(-1), shift_w(0), shift_w(1))          # taps kx = 0, 1, 2
    dww = dww_ref[...].astype(jnp.float32)              # (9, C) depthwise taps

    # --- 3x3 depthwise conv: 9 FMAs in W-shifted space, only 3 H shifts ------
    acc = jnp.zeros((H, W, C), jnp.float32)
    zero_row = jnp.zeros((1, W, C), jnp.float32)
    for ky in range(3):
        part = (xw[0] * dww[ky * 3 + 0]
                + xw[1] * dww[ky * 3 + 1]
                + xw[2] * dww[ky * 3 + 2])
        dy = ky - 1
        if dy == 0:
            acc = acc + part
        elif dy == 1:      # out[y] += part[y + 1]
            acc = acc + jnp.concatenate([part[1:], zero_row], axis=0)
        else:              # out[y] += part[y - 1]
            acc = acc + jnp.concatenate([zero_row, part[:-1]], axis=0)

    acc = acc + dwb_ref[...].astype(jnp.float32)        # (1, C) broadcast

    # --- exact erf-GELU (matches torch.nn.GELU default) ----------------------
    act = 0.5 * acc * (1.0 + jax.lax.erf(acc * 0.7071067811865476))

    # --- fc2 on the MXU; hidden activation never leaves VMEM -----------------
    act2d = act.astype(w2_ref.dtype).reshape(H * W, C)
    y = jnp.dot(act2d, w2_ref[...], preferred_element_type=jnp.float32)
    y = y + b2_ref[...].astype(jnp.float32)
    o_ref[...] = y.reshape(1, H * W, -1).astype(o_ref.dtype)


# ---------------------------------------------------------------------------
# Full forward:  x (B, N, C_in) -> fc1 -> dwconv -> GELU -> fc2 -> (B, N, C_out)
# ---------------------------------------------------------------------------
def mlp_forward(x, H, W, params):
    B, N, C_in = x.shape
    assert N == H * W
    hidden = params["fc1_w"].shape[1]
    out_f = params["fc2_w"].shape[1]

    kernel = functools.partial(_mlp_fused_kernel, H=H, W=W)
    return pl.pallas_call(
        kernel,
        out_shape=jax.ShapeDtypeStruct((B, N, out_f), x.dtype),
        grid=(B,),
        in_specs=[
            pl.BlockSpec((1, N, C_in), lambda b: (b, 0, 0)),   # stream one image per step
            pl.BlockSpec((C_in, hidden), lambda b: (0, 0)),    # fc1 weight resident
            pl.BlockSpec((1, hidden), lambda b: (0, 0)),       # fc1 bias resident
            pl.BlockSpec((9, hidden), lambda b: (0, 0)),       # dw taps resident
            pl.BlockSpec((1, hidden), lambda b: (0, 0)),       # dw bias resident
            pl.BlockSpec((hidden, out_f), lambda b: (0, 0)),   # fc2 weight resident
            pl.BlockSpec((1, out_f), lambda b: (0, 0)),        # fc2 bias resident
        ],
        out_specs=pl.BlockSpec((1, N, out_f), lambda b: (b, 0, 0)),
        compiler_params=pltpu.CompilerParams(dimension_semantics=("parallel",)),
    )(
        x,
        params["fc1_w"], params["fc1_b"].reshape(1, hidden),
        params["dw_w"].reshape(9, hidden), params["dw_b"].reshape(1, hidden),
        params["fc2_w"], params["fc2_b"].reshape(1, out_f),
    )


# ---------------------------------------------------------------------------
# Deterministic parameter init (mirrors Mlp._init_weights)
# ---------------------------------------------------------------------------
def init_params(key, in_features, hidden_features, out_features, dtype=jnp.float32):
    k1, k2, k3 = jax.random.split(key, 3)
    # Linear: trunc_normal(std=0.02), bias 0 (weights stored as (in, out)).
    fc1_w = 0.02 * jax.random.truncated_normal(k1, -2.0, 2.0, (in_features, hidden_features), dtype)
    fc2_w = 0.02 * jax.random.truncated_normal(k2, -2.0, 2.0, (hidden_features, out_features), dtype)
    fc1_b = jnp.zeros((hidden_features,), dtype)
    fc2_b = jnp.zeros((out_features,), dtype)
    # Depthwise conv: normal(0, sqrt(2/fan_out)), fan_out = 3*3*dim/dim = 9, bias 0.
    dw_std = math.sqrt(2.0 / 9.0)
    dw_w = dw_std * jax.random.normal(k3, (3, 3, hidden_features), dtype)
    dw_b = jnp.zeros((hidden_features,), dtype)
    return dict(fc1_w=fc1_w, fc1_b=fc1_b, fc2_w=fc2_w, fc2_b=fc2_b, dw_w=dw_w, dw_b=dw_b)


# ---------------------------------------------------------------------------
# Pure-JAX reference (correctness check)
# ---------------------------------------------------------------------------
def mlp_reference(x, H, W, params):
    B, N, C = x.shape
    h = x.reshape(B * N, C) @ params["fc1_w"] + params["fc1_b"]
    hid = params["fc1_w"].shape[1]
    img = h.reshape(B, H, W, hid)
    imgp = jnp.pad(img, ((0, 0), (1, 1), (1, 1), (0, 0)))
    acc = jnp.zeros_like(img)
    for ky in range(3):
        for kx in range(3):
            acc = acc + imgp[:, ky:ky + H, kx:kx + W, :] * params["dw_w"][ky, kx, :]
    acc = acc + params["dw_b"]
    act = 0.5 * acc * (1.0 + jax.lax.erf(acc / jnp.sqrt(2.0)))
    y = act.reshape(B * N, hid) @ params["fc2_w"] + params["fc2_b"]
    return y.reshape(B, N, -1)


if __name__ == "__main__":
    # Small shapes: batch=2, H=W=8 (N=64 tokens), in_features=32, hidden=64.
    B, H, W = 2, 8, 8
    N = H * W
    in_features, hidden_features = 32, 64

    key = jax.random.PRNGKey(0)
    kx, kp = jax.random.split(key)
    x = jax.random.normal(kx, (B, N, in_features), jnp.float32)
    params = init_params(kp, in_features, hidden_features, in_features)

    out = mlp_forward(x, H, W, params)
    out = jax.block_until_ready(out)

    ref = mlp_reference(x, H, W, params)
    assert out.shape == (B, N, in_features)
    assert jnp.allclose(out, ref, atol=2e-4, rtol=2e-4), "mismatch vs reference"

    print("KERNEL_OK")
</pallas_src>

<mosaic_0001>
module attributes {stable_mosaic.version = 11 : i64} {
  func.func @_mlp_fused_kernel(%arg0: i32, %arg1: memref<1x64x32xf32, #tpu.memory_space<vmem>>, %arg2: memref<32x64xf32, #tpu.memory_space<vmem>>, %arg3: memref<1x64xf32, #tpu.memory_space<vmem>>, %arg4: memref<9x64xf32, #tpu.memory_space<vmem>>, %arg5: memref<1x64xf32, #tpu.memory_space<vmem>>, %arg6: memref<64x32xf32, #tpu.memory_space<vmem>>, %arg7: memref<1x32xf32, #tpu.memory_space<vmem>>, %arg8: memref<1x64x32xf32, #tpu.memory_space<vmem>>) attributes {dimension_semantics = [#tpu.dimension_semantics<parallel>], iteration_bounds = array<i64: 2>, scalar_prefetch = 0 : i64, scratch_operands = 0 : i64, tpu.core_type = #tpu.core_type<tc>, window_params = [{transform_indices = @transform_0, window_bounds = array<i64: 1, 64, 32>}, {pipeline_mode = #tpu.pipeline_mode<synchronous>, transform_indices = @transform_1, window_bounds = array<i64: 32, 64>}, {pipeline_mode = #tpu.pipeline_mode<synchronous>, transform_indices = @transform_2, window_bounds = array<i64: 1, 64>}, {pipeline_mode = #tpu.pipeline_mode<synchronous>, transform_indices = @transform_3, window_bounds = array<i64: 9, 64>}, {pipeline_mode = #tpu.pipeline_mode<synchronous>, transform_indices = @transform_4, window_bounds = array<i64: 1, 64>}, {pipeline_mode = #tpu.pipeline_mode<synchronous>, transform_indices = @transform_5, window_bounds = array<i64: 64, 32>}, {pipeline_mode = #tpu.pipeline_mode<synchronous>, transform_indices = @transform_6, window_bounds = array<i64: 1, 32>}, {transform_indices = @transform_7, window_bounds = array<i64: 1, 64, 32>}]} {
    %c0 = arith.constant 0 : index
    %c0_0 = arith.constant 0 : index
    %c0_1 = arith.constant 0 : index
    %0 = vector.load %arg1[%c0, %c0_0, %c0_1] : memref<1x64x32xf32, #tpu.memory_space<vmem>>, vector<1x64x32xf32>
    %1 = vector.shape_cast %0 : vector<1x64x32xf32> to vector<64x32xf32>
    %c0_2 = arith.constant 0 : index
    %c0_3 = arith.constant 0 : index
    %2 = vector.load %arg2[%c0_2, %c0_3] : memref<32x64xf32, #tpu.memory_space<vmem>>, vector<32x64xf32>
    %cst = arith.constant dense<0.000000e+00> : vector<64x64xf32>
    %3 = tpu.matmul %1, %2, %cst {dimension_numbers = #tpu.dot_dimension_numbers<[1], [0], [0], [1], [0, 0, 1, 1], [], []>} : vector<64x32xf32>, vector<32x64xf32>, vector<64x64xf32> -> vector<64x64xf32>
    %c0_4 = arith.constant 0 : index
    %c0_5 = arith.constant 0 : index
    %4 = vector.load %arg3[%c0_4, %c0_5] : memref<1x64xf32, #tpu.memory_space<vmem>>, vector<1x64xf32>
    %5 = vector.broadcast %4 : vector<1x64xf32> to vector<64x64xf32>
    %6 = arith.addf %3, %5 : vector<64x64xf32>
    %7 = vector.shape_cast %6 : vector<64x64xf32> to vector<8x8x64xf32>
    %8 = tpu.iota {dimensions = array<i32: 1>} : vector<1x8x1xi32>
    %c1_i32 = arith.constant 1 : i32
    %9 = tpu.dynamic_rotate %7 by %c1_i32 dim 1 : vector<8x8x64xf32>, i32 -> vector<8x8x64xf32>
    %c1_i32_6 = arith.constant 1 : i32
    %10 = vector.broadcast %c1_i32_6 : i32 to vector<1x8x1xi32>
    %11 = arith.cmpi sge, %8, %10 : vector<1x8x1xi32>
    %cst_7 = arith.constant 0.000000e+00 : f32
    %12 = vector.shape_cast %11 : vector<1x8x1xi1> to vector<1x8x1xi1>
    %13 = vector.broadcast %12 : vector<1x8x1xi1> to vector<8x8x64xi1>
    %14 = vector.broadcast %cst_7 : f32 to vector<8x8x64xf32>
    %15 = arith.select %13, %9, %14 : vector<8x8x64xi1>, vector<8x8x64xf32>
    %c7_i32 = arith.constant 7 : i32
    %16 = tpu.dynamic_rotate %7 by %c7_i32 dim 1 : vector<8x8x64xf32>, i32 -> vector<8x8x64xf32>
    %c7_i32_8 = arith.constant 7 : i32
    %17 = vector.broadcast %c7_i32_8 : i32 to vector<1x8x1xi32>
    %18 = arith.cmpi slt, %8, %17 : vector<1x8x1xi32>
    %cst_9 = arith.constant 0.000000e+00 : f32
    %19 = vector.shape_cast %18 : vector<1x8x1xi1> to vector<1x8x1xi1>
    %20 = vector.broadcast %19 : vector<1x8x1xi1> to vector<8x8x64xi1>
    %21 = vector.broadcast %cst_9 : f32 to vector<8x8x64xf32>
    %22 = arith.select %20, %16, %21 : vector<8x8x64xi1>, vector<8x8x64xf32>
    %c0_10 = arith.constant 0 : index
    %c0_11 = arith.constant 0 : index
    %23 = vector.load %arg4[%c0_10, %c0_11] : memref<9x64xf32, #tpu.memory_space<vmem>>, vector<9x64xf32>
    %cst_12 = arith.constant 0.000000e+00 : f32
    %24 = vector.broadcast %cst_12 : f32 to vector<8x8x64xf32>
    %cst_13 = arith.constant 0.000000e+00 : f32
    %25 = vector.broadcast %cst_13 : f32 to vector<1x8x64xf32>
    %26 = vector.extract_strided_slice %23 {offsets = [0, 0], sizes = [1, 64], strides = [1, 1]} : vector<9x64xf32> to vector<1x64xf32>
    %27 = vector.shape_cast %26 : vector<1x64xf32> to vector<64xf32>
    %28 = vector.shape_cast %27 : vector<64xf32> to vector<1x1x64xf32>
    %29 = vector.broadcast %28 : vector<1x1x64xf32> to vector<8x8x64xf32>
    %30 = arith.mulf %15, %29 : vector<8x8x64xf32>
    %31 = vector.extract_strided_slice %23 {offsets = [1, 0], sizes = [1, 64], strides = [1, 1]} : vector<9x64xf32> to vector<1x64xf32>
    %32 = vector.shape_cast %31 : vector<1x64xf32> to vector<64xf32>
    %33 = vector.shape_cast %32 : vector<64xf32> to vector<1x1x64xf32>
    %34 = vector.broadcast %33 : vector<1x1x64xf32> to vector<8x8x64xf32>
    %35 = arith.mulf %7, %34 : vector<8x8x64xf32>
    %36 = arith.addf %30, %35 : vector<8x8x64xf32>
    %37 = vector.extract_strided_slice %23 {offsets = [2, 0], sizes = [1, 64], strides = [1, 1]} : vector<9x64xf32> to vector<1x64xf32>
    %38 = vector.shape_cast %37 : vector<1x64xf32> to vector<64xf32>
    %39 = vector.shape_cast %38 : vector<64xf32> to vector<1x1x64xf32>
    %40 = vector.broadcast %39 : vector<1x1x64xf32> to vector<8x8x64xf32>
    %41 = arith.mulf %22, %40 : vector<8x8x64xf32>
    %42 = arith.addf %36, %41 : vector<8x8x64xf32>
    %43 = vector.extract_strided_slice %42 {offsets = [0, 0, 0], sizes = [7, 8, 64], strides = [1, 1, 1]} : vector<8x8x64xf32> to vector<7x8x64xf32>
    %44 = tpu.concatenate %25, %43 in 0 : vector<1x8x64xf32>, vector<7x8x64xf32> -> vector<8x8x64xf32>
    %45 = arith.addf %24, %44 : vector<8x8x64xf32>
    %46 = vector.extract_strided_slice %23 {offsets = [3, 0], sizes = [1, 64], strides = [1, 1]} : vector<9x64xf32> to vector<1x64xf32>
    %47 = vector.shape_cast %46 : vector<1x64xf32> to vector<64xf32>
    %48 = vector.shape_cast %47 : vector<64xf32> to vector<1x1x64xf32>
    %49 = vector.broadcast %48 : vector<1x1x64xf32> to vector<8x8x64xf32>
    %50 = arith.mulf %15, %49 : vector<8x8x64xf32>
    %51 = vector.extract_strided_slice %23 {offsets = [4, 0], sizes = [1, 64], strides = [1, 1]} : vector<9x64xf32> to vector<1x64xf32>
    %52 = vector.shape_cast %51 : vector<1x64xf32> to vector<64xf32>
    %53 = vector.shape_cast %52 : vector<64xf32> to vector<1x1x64xf32>
    %54 = vector.broadcast %53 : vector<1x1x64xf32> to vector<8x8x64xf32>
    %55 = arith.mulf %7, %54 : vector<8x8x64xf32>
    %56 = arith.addf %50, %55 : vector<8x8x64xf32>
    %57 = vector.extract_strided_slice %23 {offsets = [5, 0], sizes = [1, 64], strides = [1, 1]} : vector<9x64xf32> to vector<1x64xf32>
    %58 = vector.shape_cast %57 : vector<1x64xf32> to vector<64xf32>
    %59 = vector.shape_cast %58 : vector<64xf32> to vector<1x1x64xf32>
    %60 = vector.broadcast %59 : vector<1x1x64xf32> to vector<8x8x64xf32>
    %61 = arith.mulf %22, %60 : vector<8x8x64xf32>
    %62 = arith.addf %56, %61 : vector<8x8x64xf32>
    %63 = arith.addf %45, %62 : vector<8x8x64xf32>
    %64 = vector.extract_strided_slice %23 {offsets = [6, 0], sizes = [1, 64], strides = [1, 1]} : vector<9x64xf32> to vector<1x64xf32>
    %65 = vector.shape_cast %64 : vector<1x64xf32> to vector<64xf32>
    %66 = vector.shape_cast %65 : vector<64xf32> to vector<1x1x64xf32>
    %67 = vector.broadcast %66 : vector<1x1x64xf32> to vector<8x8x64xf32>
    %68 = arith.mulf %15, %67 : vector<8x8x64xf32>
    %69 = vector.extract_strided_slice %23 {offsets = [7, 0], sizes = [1, 64], strides = [1, 1]} : vector<9x64xf32> to vector<1x64xf32>
    %70 = vector.shape_cast %69 : vector<1x64xf32> to vector<64xf32>
    %71 = vector.shape_cast %70 : vector<64xf32> to vector<1x1x64xf32>
    %72 = vector.broadcast %71 : vector<1x1x64xf32> to vector<8x8x64xf32>
    %73 = arith.mulf %7, %72 : vector<8x8x64xf32>
    %74 = arith.addf %68, %73 : vector<8x8x64xf32>
    %75 = vector.extract_strided_slice %23 {offsets = [8, 0], sizes = [1, 64], strides = [1, 1]} : vector<9x64xf32> to vector<1x64xf32>
    %76 = vector.shape_cast %75 : vector<1x64xf32> to vector<64xf32>
    %77 = vector.shape_cast %76 : vector<64xf32> to vector<1x1x64xf32>
    %78 = vector.broadcast %77 : vector<1x1x64xf32> to vector<8x8x64xf32>
    %79 = arith.mulf %22, %78 : vector<8x8x64xf32>
    %80 = arith.addf %74, %79 : vector<8x8x64xf32>
    %81 = vector.extract_strided_slice %80 {offsets = [1, 0, 0], sizes = [7, 8, 64], strides = [1, 1, 1]} : vector<8x8x64xf32> to vector<7x8x64xf32>
    %82 = tpu.concatenate %81, %25 in 0 : vector<7x8x64xf32>, vector<1x8x64xf32> -> vector<8x8x64xf32>
    %83 = arith.addf %63, %82 : vector<8x8x64xf32>
    %c0_14 = arith.constant 0 : index
    %c0_15 = arith.constant 0 : index
    %84 = vector.load %arg5[%c0_14, %c0_15] : memref<1x64xf32, #tpu.memory_space<vmem>>, vector<1x64xf32>
    %85 = vector.shape_cast %84 : vector<1x64xf32> to vector<1x1x64xf32>
    %86 = vector.broadcast %85 : vector<1x1x64xf32> to vector<8x8x64xf32>
    %87 = arith.addf %83, %86 : vector<8x8x64xf32>
    %cst_16 = arith.constant 5.000000e-01 : f32
    %88 = vector.broadcast %cst_16 : f32 to vector<8x8x64xf32>
    %89 = arith.mulf %88, %87 : vector<8x8x64xf32>
    %cst_17 = arith.constant 0.707106769 : f32
    %90 = vector.broadcast %cst_17 : f32 to vector<8x8x64xf32>
    %91 = arith.mulf %87, %90 : vector<8x8x64xf32>
    %92 = math.erf %91 : vector<8x8x64xf32>
    %cst_18 = arith.constant 1.000000e+00 : f32
    %93 = vector.broadcast %cst_18 : f32 to vector<8x8x64xf32>
    %94 = arith.addf %93, %92 : vector<8x8x64xf32>
    %95 = arith.mulf %89, %94 : vector<8x8x64xf32>
    %96 = vector.shape_cast %95 : vector<8x8x64xf32> to vector<64x64xf32>
    %c0_19 = arith.constant 0 : index
    %c0_20 = arith.constant 0 : index
    %97 = vector.load %arg6[%c0_19, %c0_20] : memref<64x32xf32, #tpu.memory_space<vmem>>, vector<64x32xf32>
    %cst_21 = arith.constant dense<0.000000e+00> : vector<64x32xf32>
    %98 = tpu.matmul %96, %97, %cst_21 {dimension_numbers = #tpu.dot_dimension_numbers<[1], [0], [0], [1], [0, 0, 1, 1], [], []>} : vector<64x64xf32>, vector<64x32xf32>, vector<64x32xf32> -> vector<64x32xf32>
    %c0_22 = arith.constant 0 : index
    %c0_23 = arith.constant 0 : index
    %99 = vector.load %arg7[%c0_22, %c0_23] : memref<1x32xf32, #tpu.memory_space<vmem>>, vector<1x32xf32>
    %100 = vector.broadcast %99 : vector<1x32xf32> to vector<64x32xf32>
    %101 = arith.addf %98, %100 : vector<64x32xf32>
    %102 = vector.shape_cast %101 : vector<64x32xf32> to vector<1x64x32xf32>
    %c0_24 = arith.constant 0 : index
    %c0_25 = arith.constant 0 : index
    %c0_26 = arith.constant 0 : index
    %103 = vector.load %arg8[%c0_24, %c0_25, %c0_26] : memref<1x64x32xf32, #tpu.memory_space<vmem>>, vector<1x64x32xf32>
    tpu.vector_store %arg8[%c0_24, %c0_25, %c0_26], %102 {strides = array<i32>} : memref<1x64x32xf32, #tpu.memory_space<vmem>>, vector<1x64x32xf32>,
    return
  }
  func.func @transform_0(%arg0: i32) -> (i32, i32, i32) {
    %c0_i32 = arith.constant 0 : i32
    %c0_i32_0 = arith.constant 0 : i32
    %c0_i32_1 = arith.constant 0 : i32
    return %arg0, %c0_i32, %c0_i32_0 : i32, i32, i32
  }
  func.func @transform_1(%arg0: i32) -> (i32, i32) {
    %c0_i32 = arith.constant 0 : i32
    %c0_i32_0 = arith.constant 0 : i32
    %c0_i32_1 = arith.constant 0 : i32
    return %c0_i32, %c0_i32_0 : i32, i32
  }
  func.func @transform_2(%arg0: i32) -> (i32, i32) {
    %c0_i32 = arith.constant 0 : i32
    %c0_i32_0 = arith.constant 0 : i32
    %c0_i32_1 = arith.constant 0 : i32
    return %c0_i32, %c0_i32_0 : i32, i32
  }
  func.func @transform_3(%arg0: i32) -> (i32, i32) {
    %c0_i32 = arith.constant 0 : i32
    %c0_i32_0 = arith.constant 0 : i32
    %c0_i32_1 = arith.constant 0 : i32
    return %c0_i32, %c0_i32_0 : i32, i32
  }
  func.func @transform_4(%arg0: i32) -> (i32, i32) {
    %c0_i32 = arith.constant 0 : i32
    %c0_i32_0 = arith.constant 0 : i32
    %c0_i32_1 = arith.constant 0 : i32
    return %c0_i32, %c0_i32_0 : i32, i32
  }
  func.func @transform_5(%arg0: i32) -> (i32, i32) {
    %c0_i32 = arith.constant 0 : i32
    %c0_i32_0 = arith.constant 0 : i32
    %c0_i32_1 = arith.constant 0 : i32
    return %c0_i32, %c0_i32_0 : i32, i32
  }
  func.func @transform_6(%arg0: i32) -> (i32, i32) {
    %c0_i32 = arith.constant 0 : i32
    %c0_i32_0 = arith.constant 0 : i32
    %c0_i32_1 = arith.constant 0 : i32
    return %c0_i32, %c0_i32_0 : i32, i32
  }
  func.func @transform_7(%arg0: i32) -> (i32, i32, i32) {
    %c0_i32 = arith.constant 0 : i32
    %c0_i32_0 = arith.constant 0 : i32
    %c0_i32_1 = arith.constant 0 : i32
    return %arg0, %c0_i32, %c0_i32_0 : i32, i32, i32
  }
}

</mosaic_0001>

<llo_original>
// kernel: tpu_custom_call.1
$region0: #{tpu_custom_call.1}
  #allocation0 [shape = 'u32[]', space=smem, size = 0x4, offset = 0x4, fixed_abs, tag = 'smem constant byte address 0x4 - core index']
  #allocation1 [shape = 'u32[144,128]{1,0:T(1,128)}', space=vmem, size = 0x12000, scoped, tag = 'internal scratch']
  %s0 = inlined_call_operand.vmem [shape: f32[2,64,32], index: 0, kind: input, shape index: {}]
  %s1 = inlined_call_operand.vmem [shape: f32[32,64], index: 1, kind: input, shape index: {}]
  %s2 = inlined_call_operand.vmem [shape: f32[1,64], index: 2, kind: input, shape index: {}]
  %s3 = inlined_call_operand.vmem [shape: f32[9,64], index: 3, kind: input, shape index: {}]
  %s4 = inlined_call_operand.vmem [shape: f32[1,64], index: 4, kind: input, shape index: {}]
  %s5 = inlined_call_operand.vmem [shape: f32[64,32], index: 5, kind: input, shape index: {}]
  %s6 = inlined_call_operand.vmem [shape: f32[1,32], index: 6, kind: input, shape index: {}]
  %s7 = inlined_call_operand.vmem [shape: f32[2,64,32], index: 7, kind: output, shape index: {}]
  %s8 = sld [smem:[#allocation0]]
  $region61: #{tpu_custom_call.1} parent=0
    _
  %s10 = ssub.s32 1, %s8
  %s11 = scalar_select 0, %s10, %s8
  loop: start=0, step=1, limit=4
  $region2: #{tpu_custom_call.1} parent=0 // loop_pre_header
    _
  $region3: #{tpu_custom_call.1} parent=0 // loop_header
    %s13 = sphi 0, %s17
    %p14 = scmp.ge.s32.totalorder %s13, 4
    %s23 = sphi 0, %s25
    %s26 = sphi 0, %s23
    %s27 = sphi 0, %s26
    %s43 = sphi 0, %s27
    %s47 = sphi 0, %s47
    %s49 = sphi 0, %s47
    %s50 = sphi 0, %s49
    %s64 = sphi 0, %s50
    %s68 = sphi 0, %s68
    %s70 = sphi 0, %s68
    %s71 = sphi 0, %s70
    %s85 = sphi 0, %s71
    %s89 = sphi 0, %s89
    %s91 = sphi 0, %s89
    %s92 = sphi 0, %s91
    %s106 = sphi 0, %s92
    %s110 = sphi 0, %s110
    %s112 = sphi 0, %s110
    %s113 = sphi 0, %s112
    %s127 = sphi 0, %s113
    %s131 = sphi 0, %s131
    %s133 = sphi 0, %s131
    %s134 = sphi 0, %s133
    %s148 = sphi 0, %s134
    %s152 = sphi 0, %s152
    %s154 = sphi 0, %s152
    %s155 = sphi 0, %s154
    %s169 = sphi 0, %s155
    %s175 = sphi 0, %s177
    %s178 = sphi 0, %s175
    %s179 = sphi 0, %s178
    %s195 = sphi 0, %s179
  $region4: #{tpu_custom_call.1} parent=0 // loop_header_branch
    %16 = sbr.rel (%p14) target = $region8
  $region5: #{tpu_custom_call.1} parent=0 // loop_body
    %s18 = ssub.s32 %s13, 1
    %s19 = ssub.s32 %s13, 2
    %s20 = sadd.s32 %s13, 1
    %s21 = ssub.s32 %s13, %s20
    %p22 = scmp.eq.s32.totalorder %s21, 0
    %s24 = sadd.s32 %s23, 1
    %s25 = scalar_select %p22, %s23, %s24
    %p28 = pneg %p22
    %p29 = scmp.eq.s32.totalorder %s13, 1
    %p30 = por %p28, %p29
    %p31 = scmp.ne.s32.totalorder %s23, %s26
    %p32 = scmp.eq.s32.totalorder %s13, 0
    %p33 = por %p31, %p32
    %p34 = scmp.ne.s32.totalorder %s23, %s26
    %p35 = scmp.eq.s32.totalorder %s18, 1
    %p36 = por %p34, %p35
    %p37 = scmp.ne.s32.totalorder %s26, %s27
    %p38 = scmp.eq.s32.totalorder %s18, 0
    %p39 = por %p37, %p38
    %p40 = scmp.ne.s32.totalorder %s26, %s27
    %p41 = scmp.eq.s32.totalorder %s19, 1
    %p42 = por %p40, %p41
    %p44 = scmp.ne.s32.totalorder %s27, %s43
    %p45 = scmp.eq.s32.totalorder %s19, 0
    %p46 = por %p44, %p45
    %s48 = sadd.s32 %s47, 1
    %p51 = scmp.eq.s32.totalorder %s13, 1
    %p52 = scmp.ne.s32.totalorder %s47, %s49
    %p53 = scmp.eq.s32.totalorder %s13, 0
    %p54 = por %p52, %p53
    %p55 = scmp.ne.s32.totalorder %s47, %s49
    %p56 = scmp.eq.s32.totalorder %s18, 1
    %p57 = por %p55, %p56
    %p58 = scmp.ne.s32.totalorder %s49, %s50
    %p59 = scmp.eq.s32.totalorder %s18, 0
    %p60 = por %p58, %p59
    %p61 = scmp.ne.s32.totalorder %s49, %s50
    %p62 = scmp.eq.s32.totalorder %s19, 1
    %p63 = por %p61, %p62
    %p65 = scmp.ne.s32.totalorder %s50, %s64
    %p66 = scmp.eq.s32.totalorder %s19, 0
    %p67 = por %p65, %p66
    %s69 = sadd.s32 %s68, 1
    %p72 = scmp.eq.s32.totalorder %s13, 1
    %p73 = scmp.ne.s32.totalorder %s68, %s70
    %p74 = scmp.eq.s32.totalorder %s13, 0
    %p75 = por %p73, %p74
    %p76 = scmp.ne.s32.totalorder %s68, %s70
    %p77 = scmp.eq.s32.totalorder %s18, 1
    %p78 = por %p76, %p77
    %p79 = scmp.ne.s32.totalorder %s70, %s71
    %p80 = scmp.eq.s32.totalorder %s18, 0
    %p81 = por %p79, %p80
    %p82 = scmp.ne.s32.totalorder %s70, %s71
    %p83 = scmp.eq.s32.totalorder %s19, 1
    %p84 = por %p82, %p83
    %p86 = scmp.ne.s32.totalorder %s71, %s85
    %p87 = scmp.eq.s32.totalorder %s19, 0
    %p88 = por %p86, %p87
    %s90 = sadd.s32 %s89, 1
    %p93 = scmp.eq.s32.totalorder %s13, 1
    %p94 = scmp.ne.s32.totalorder %s89, %s91
    %p95 = scmp.eq.s32.totalorder %s13, 0
    %p96 = por %p94, %p95
    %p97 = scmp.ne.s32.totalorder %s89, %s91
    %p98 = scmp.eq.s32.totalorder %s18, 1
    %p99 = por %p97, %p98
    %p100 = scmp.ne.s32.totalorder %s91, %s92
    %p101 = scmp.eq.s32.totalorder %s18, 0
    %p102 = por %p100, %p101
    %p103 = scmp.ne.s32.totalorder %s91, %s92
    %p104 = scmp.eq.s32.totalorder %s19, 1
    %p105 = por %p103, %p104
    %p107 = scmp.ne.s32.totalorder %s92, %s106
    %p108 = scmp.eq.s32.totalorder %s19, 0
    %p109 = por %p107, %p108
    %s111 = sadd.s32 %s110, 1
    %p114 = scmp.eq.s32.totalorder %s13, 1
    %p115 = scmp.ne.s32.totalorder %s110, %s112
    %p116 = scmp.eq.s32.totalorder %s13, 0
    %p117 = por %p115, %p116
    %p118 = scmp.ne.s32.totalorder %s110, %s112
    %p119 = scmp.eq.s32.totalorder %s18, 1
    %p120 = por %p118, %p119
    %p121 = scmp.ne.s32.totalorder %s112, %s113
    %p122 = scmp.eq.s32.totalorder %s18, 0
    %p123 = por %p121, %p122
    %p124 = scmp.ne.s32.totalorder %s112, %s113
    %p125 = scmp.eq.s32.totalorder %s19, 1
    %p126 = por %p124, %p125
    %p128 = scmp.ne.s32.totalorder %s113, %s127
    %p129 = scmp.eq.s32.totalorder %s19, 0
    %p130 = por %p128, %p129
    %s132 = sadd.s32 %s131, 1
    %p135 = scmp.eq.s32.totalorder %s13, 1
    %p136 = scmp.ne.s32.totalorder %s131, %s133
    %p137 = scmp.eq.s32.totalorder %s13, 0
    %p138 = por %p136, %p137
    %p139 = scmp.ne.s32.totalorder %s131, %s133
    %p140 = scmp.eq.s32.totalorder %s18, 1
    %p141 = por %p139, %p140
    %p142 = scmp.ne.s32.totalorder %s133, %s134
    %p143 = scmp.eq.s32.totalorder %s18, 0
    %p144 = por %p142, %p143
    %p145 = scmp.ne.s32.totalorder %s133, %s134
    %p146 = scmp.eq.s32.totalorder %s19, 1
    %p147 = por %p145, %p146
    %p149 = scmp.ne.s32.totalorder %s134, %s148
    %p150 = scmp.eq.s32.totalorder %s19, 0
    %p151 = por %p149, %p150
    %s153 = sadd.s32 %s152, 1
    %p156 = scmp.eq.s32.totalorder %s13, 1
    %p157 = scmp.ne.s32.totalorder %s152, %s154
    %p158 = scmp.eq.s32.totalorder %s13, 0
    %p159 = por %p157, %p158
    %p160 = scmp.ne.s32.totalorder %s152, %s154
    %p161 = scmp.eq.s32.totalorder %s18, 1
    %p162 = por %p160, %p161
    %p163 = scmp.ne.s32.totalorder %s154, %s155
    %p164 = scmp.eq.s32.totalorder %s18, 0
    %p165 = por %p163, %p164
    %p166 = scmp.ne.s32.totalorder %s154, %s155
    %p167 = scmp.eq.s32.totalorder %s19, 1
    %p168 = por %p166, %p167
    %p170 = scmp.ne.s32.totalorder %s155, %s169
    %p171 = scmp.eq.s32.totalorder %s19, 0
    %p172 = por %p170, %p171
    %s173 = ssub.s32 %s13, %s20
    %p174 = scmp.eq.s32.totalorder %s173, 0
    %s176 = sadd.s32 %s175, 1
    %s177 = scalar_select %p174, %s175, %s176
    %p180 = pneg %p174
    %p181 = scmp.eq.s32.totalorder %s13, 1
    %p182 = por %p180, %p181
    %p183 = scmp.ne.s32.totalorder %s175, %s178
    %p184 = scmp.eq.s32.totalorder %s13, 0
    %p185 = por %p183, %p184
    %p186 = scmp.ne.s32.totalorder %s175, %s178
    %p187 = scmp.eq.s32.totalorder %s18, 1
    %p188 = por %p186, %p187
    %p189 = scmp.ne.s32.totalorder %s178, %s179
    %p190 = scmp.eq.s32.totalorder %s18, 0
    %p191 = por %p189, %p190
    %p192 = scmp.ne.s32.totalorder %s178, %s179
    %p193 = scmp.eq.s32.totalorder %s19, 1
    %p194 = por %p192, %p193
    %p196 = scmp.ne.s32.totalorder %s179, %s195
    %p197 = scmp.eq.s32.totalorder %s19, 0
    %p198 = por %p196, %p197
    %p199 = scmp.le.s32.totalorder 1, %s13
    %p200 = scmp.lt.s32.totalorder %s13, 3
    %p201 = pnand %p199, %p200
    %p202 = pneg %p201
    // Predicated region
    $region9: #{tpu_custom_call.1} parent=5 // pred_check
      _
    $region10: #{tpu_custom_call.1} parent=5 // pred_check_branch
      %204 = sbr.rel (%p201) target = $region12
    $region11: #{tpu_custom_call.1} parent=5 // pred_region
      %s205 = ssub.s32 %s13, 1
      // Predicated region
      $region13: #{tpu_custom_call.1} parent=11 // pred_check
        %p206 = pneg %p60
      $region14: #{tpu_custom_call.1} parent=11 // pred_check_branch
        %208 = sbr.rel (%p206) target = $region16
      $region15: #{tpu_custom_call.1} parent=11 // pred_region
        _
      $region16: #{tpu_custom_call.1} parent=11 // pred_fallthru
        _
      // Predicated region
      $region17: #{tpu_custom_call.1} parent=11 // pred_check
        %p209 = pneg %p81
      $region18: #{tpu_custom_call.1} parent=11 // pred_check_branch
        %211 = sbr.rel (%p209) target = $region20
      $region19: #{tpu_custom_call.1} parent=11 // pred_region
        _
      $region20: #{tpu_custom_call.1} parent=11 // pred_fallthru
        _
      // Predicated region
      $region21: #{tpu_custom_call.1} parent=11 // pred_check
        %p212 = pneg %p102
      $region22: #{tpu_custom_call.1} parent=11 // pred_check_branch
        %214 = sbr.rel (%p212) target = $region24
      $region23: #{tpu_custom_call.1} parent=11 // pred_region
        _
      $region24: #{tpu_custom_call.1} parent=11 // pred_fallthru
        _
      // Predicated region
      $region25: #{tpu_custom_call.1} parent=11 // pred_check
        %p215 = pneg %p123
      $region26: #{tpu_custom_call.1} parent=11 // pred_check_branch
        %217 = sbr.rel (%p215) target = $region28
      $region27: #{tpu_custom_call.1} parent=11 // pred_region
        _
      $region28: #{tpu_custom_call.1} parent=11 // pred_fallthru
        _
      // Predicated region
      $region29: #{tpu_custom_call.1} parent=11 // pred_check
        %p218 = pneg %p144
      $region30: #{tpu_custom_call.1} parent=11 // pred_check_branch
        %220 = sbr.rel (%p218) target = $region32
      $region31: #{tpu_custom_call.1} parent=11 // pred_region
        _
      $region32: #{tpu_custom_call.1} parent=11 // pred_fallthru
        _
      // Predicated region
      $region33: #{tpu_custom_call.1} parent=11 // pred_check
        %p221 = pneg %p165
      $region34: #{tpu_custom_call.1} parent=11 // pred_check_branch
        %223 = sbr.rel (%p221) target = $region36
      $region35: #{tpu_custom_call.1} parent=11 // pred_region
        _
      $region36: #{tpu_custom_call.1} parent=11 // pred_fallthru
        _
    $region12: #{tpu_custom_call.1} parent=5 // pred_fallthru
      _
    %p224 = scmp.lt.s32.totalorder %s13, 2
    // Predicated region
    $region37: #{tpu_custom_call.1} parent=5 // pred_check
      %p225 = pneg %p224
    $region38: #{tpu_custom_call.1} parent=5 // pred_check_branch
      %227 = sbr.rel (%p225) target = $region40
    $region39: #{tpu_custom_call.1} parent=5 // pred_region
      // Predicated region
      $region41: #{tpu_custom_call.1} parent=39 // pred_check
        %p228 = pneg %p33
      $region42: #{tpu_custom_call.1} parent=39 // pred_check_branch
        %230 = sbr.rel (%p228) target = $region44
      $region43: #{tpu_custom_call.1} parent=39 // pred_region
        %p231 = scmp.lt.s32.totalorder %s13, 1
        %s232 = scalar_select %p231, %s13, 1
        %s233 = smul.addr %s232, 8
        %s234 = smul.addr %s233, 8
        %s235 = scalar_lea.vmem %s0, %s234
      $region44: #{tpu_custom_call.1} parent=39 // pred_fallthru
        _
    $region40: #{tpu_custom_call.1} parent=5 // pred_fallthru
      _
    %p236 = scmp.le.s32.totalorder 1, %s13
    %p237 = scmp.lt.s32.totalorder %s13, 3
    %p238 = pnand %p236, %p237
    %p239 = pneg %p238
    // Predicated region
    $region45: #{tpu_custom_call.1} parent=5 // pred_check
      _
    $region46: #{tpu_custom_call.1} parent=5 // pred_check_branch
      %241 = sbr.rel (%p238) target = $region48
    $region47: #{tpu_custom_call.1} parent=5 // pred_region
      %s242 = ssub.s32 %s13, 1
      %p243 = scmp.lt.s32.totalorder %s18, 1
      %s244 = scalar_select %p243, %s18, 1
      %s245 = smul.addr %s244, 8
      %s246 = smul.addr %s245, 8
      %s247 = scalar_lea.vmem %s0, %s246
      %p248 = pneg %p39
      %p249 = pneg %p36
      %p250 = pneg %p60
      %p251 = pneg %p57
      %p252 = pneg %p81
      %p253 = pneg %p78
      %p254 = pneg %p102
      %p255 = pneg %p99
      %p256 = pneg %p123
      %p257 = pneg %p120
      %p258 = pneg %p144
      %p259 = pneg %p141
      %p260 = pneg %p165
      %p261 = pneg %p162
      %p262 = pneg %p191
      %p263 = pneg %p188
      %p264 = scmp.lt.s32.totalorder %s18, 1
      %s265 = scalar_select %p264, %s18, 1
      %s266 = smul.addr %s265, 8
      %s267 = smul.addr %s266, 8
      %s268 = scalar_lea.vmem %s7, %s267
      %p269 = scmp.lt.s32.totalorder %s18, 1
      %s270 = scalar_select %p269, %s18, 1
      %s271 = smul.addr %s270, 8
      %s272 = smul.addr %s271, 8
      %s273 = scalar_lea.vmem %s0, %s272
      %p274 = scmp.lt.s32.totalorder %s18, 1
      %s275 = scalar_select %p274, %s18, 1
      %s276 = smul.addr %s275, 8
      %s277 = smul.addr %s276, 8
      %s278 = scalar_lea.vmem %s7, %s277
      %v279 = vld [vmem:[%s273] sm:$0xff]
      %v280 = vld [vmem:[%s273 + $0x8] sm:$0xff]
      %v281 = vld [vmem:[%s273 + $0x10] sm:$0xff]
      %v282 = vld [vmem:[%s273 + $0x18] sm:$0xff]
      %v283 = vld [vmem:[%s273 + $0x20] sm:$0xff]
      %v284 = vld [vmem:[%s273 + $0x28] sm:$0xff]
      %v285 = vld [vmem:[%s273 + $0x30] sm:$0xff]
      %v286 = vld [vmem:[%s273 + $0x38] sm:$0xff]
      %v287 = vld [vmem:[%s1] sm:$0xff]
      %v288 = vld [vmem:[%s1 + $0x8] sm:$0xff]
      %v289 = vld [vmem:[%s1 + $0x10] sm:$0xff]
      %v290 = vld [vmem:[%s1 + $0x18] sm:$0xff]
      %v291 = vld [vmem:[%s2] sm:$0x1]
      %v293 = vlaneseq
      %v294 = vshrl.u32 %v293, 7
      %v295 = vsub.s32 0, %v294
      %v296 = vrot.slane %v291, %v295
      %vm298 = vcmask 261120
      %v300 = vsel %vm298, %v279, 0
      %v303 = vsel %vm298, %v280, 0
      %v306 = vsel %vm298, %v281, 0
      %v309 = vsel %vm298, %v282, 0
      %v312 = vsel %vm298, %v283, 0
      %v315 = vsel %vm298, %v284, 0
      %v318 = vsel %vm298, %v285, 0
      %v321 = vsel %vm298, %v286, 0
      %323 = vmatprep.subr.mxu0 0.0
      %324 = vmatpush1.msra.mxu0 %v287
      %325 = vmatprep.subr.mxu0 0.0
      %326 = vmatpush1.msra.mxu0 %v288
      %327 = vmatprep.subr.mxu0 0.0
      %328 = vmatpush1.msra.mxu0 %v289
      %329 = vmatprep.subr.mxu0 0.0
      %330 = vmatpush1.msra.mxu0 %v290
      %331 = vmatprep.subr.mxu0 0.0
      %332 = vmatpush1.msra.mxu0 0.0
      %333 = vmatprep.subr.mxu0 0.0
      %334 = vmatpush1.msra.mxu0 0.0
      %335 = vmatprep.subr.mxu0 0.0
      %336 = vmatpush1.msra.mxu0 0.0
      %337 = vmatprep.subr.mxu0 0.0
      %338 = vmatpush1.msra.mxu0 0.0
      %339 = vmatprep.subr.mxu0 0.0
      %340 = vmatpush1.msra.mxu0 0.0
      %341 = vmatprep.subr.mxu0 0.0
      %342 = vmatpush1.msra.mxu0 0.0
      %343 = vmatprep.subr.mxu0 0.0
      %344 = vmatpush1.msra.mxu0 0.0
      %345 = vmatprep.subr.mxu0 0.0
      %346 = vmatpush1.msra.mxu0 0.0
      %347 = vmatprep.subr.mxu0 0.0
      %348 = vmatpush1.msra.mxu0 0.0
      %349 = vmatprep.subr.mxu0 0.0
      %350 = vmatpush1.msra.mxu0 0.0
      %351 = vmatprep.subr.mxu0 0.0
      %352 = vmatpush1.msra.mxu0 0.0
      %353 = vmatprep.subr.mxu0 0.0
      %354 = vmatpush1.msra.mxu0 0.0
      %355 = vmatprep.subr.mxu0 0.0
      %356 = vmatpush1.msra.mxu0 0.0
      %357 = vmatprep.subr.mxu0 0.0
      %358 = vmatpush1.msra.mxu0 0.0
      %359 = vmatprep.subr.mxu0 0.0
      %360 = vmatpush1.msra.mxu0 0.0
      %361 = vmatprep.subr.mxu0 0.0
      %362 = vmatpush1.msra.mxu0 0.0
      %363 = vmatprep.subr.mxu0 0.0
      %364 = vmatpush1.msra.mxu0 0.0
      %365 = vmatprep.subr.mxu0 0.0
      %366 = vmatpush1.msra.mxu0 0.0
      %367 = vmatprep.subr.mxu0 0.0
      %368 = vmatpush1.msra.mxu0 0.0
      %369 = vmatprep.subr.mxu0 0.0
      %370 = vmatpush1.msra.mxu0 0.0
      %371 = vmatprep.subr.mxu0 0.0
      %372 = vmatpush1.msra.mxu0 0.0
      %373 = vmatprep.subr.mxu0 0.0
      %374 = vmatpush1.msra.mxu0 0.0
      %375 = vmatprep.subr.mxu0 0.0
      %376 = vmatpush1.msra.mxu0 0.0
      %377 = vmatprep.subr.mxu0 0.0
      %378 = vmatpush1.msra.mxu0 0.0
      %379 = vmatprep.subr.mxu0 0.0
      %380 = vmatpush1.msra.mxu0 0.0
      %381 = vmatprep.subr.mxu0 0.0
      %382 = vmatpush1.msra.mxu0 0.0
      %383 = vmatprep.subr.mxu0 0.0
      %384 = vmatpush1.msra.mxu0 0.0
      %385 = vmatprep.subr.mxu0 0.0
      %386 = vmatpush1.msra.mxu0 0.0
      %387 = vmatprep.mubr.f32.mxu0 0.0
      %388 = vmatmul.mubr.f32.gmra.mrb[0].mxu0 %v300
      %v389 = vpop.f32.mrb[0].mxu0
      %v390 = vadd.f32 %v296, %v389
      %v391 = vpop.f32.mrb[0].mxu0
      %392 = vmatprep.mubr.f32.mxu0 0.0
      %393 = vmatmul.mubr.f32.gmra.mrb[0].mxu0 %v303
      %v394 = vpop.f32.mrb[0].mxu0
      %v395 = vadd.f32 %v296, %v394
      %v396 = vpop.f32.mrb[0].mxu0
      %397 = vmatprep.mubr.f32.mxu0 0.0
      %398 = vmatmul.mubr.f32.gmra.mrb[0].mxu0 %v306
      %v399 = vpop.f32.mrb[0].mxu0
      %v400 = vadd.f32 %v296, %v399
      %v401 = vpop.f32.mrb[0].mxu0
      %402 = vmatprep.mubr.f32.mxu0 0.0
      %403 = vmatmul.mubr.f32.gmra.mrb[0].mxu0 %v309
      %v404 = vpop.f32.mrb[0].mxu0
      %v405 = vadd.f32 %v296, %v404
      %v406 = vpop.f32.mrb[0].mxu0
      %407 = vmatprep.mubr.f32.mxu0 0.0
      %408 = vmatmul.mubr.f32.gmra.mrb[0].mxu0 %v312
      %v409 = vpop.f32.mrb[0].mxu0
      %v410 = vadd.f32 %v296, %v409
      %v411 = vpop.f32.mrb[0].mxu0
      %412 = vmatprep.mubr.f32.mxu0 0.0
      %413 = vmatmul.mubr.f32.gmra.mrb[0].mxu0 %v315
      %v414 = vpop.f32.mrb[0].mxu0
      %v415 = vadd.f32 %v296, %v414
      %v416 = vpop.f32.mrb[0].mxu0
      %417 = vmatprep.mubr.f32.mxu0 0.0
      %418 = vmatmul.mubr.f32.gmra.mrb[0].mxu0 %v318
      %v419 = vpop.f32.mrb[0].mxu0
      %v420 = vadd.f32 %v296, %v419
      %v421 = vpop.f32.mrb[0].mxu0
      %422 = vmatprep.mubr.f32.mxu0 0.0
      %423 = vmatmul.mubr.f32.gmra.mrb[0].mxu0 %v321
      %v424 = vpop.f32.mrb[0].mxu0
      %v425 = vadd.f32 %v296, %v424
      %v426 = vpop.f32.mrb[0].mxu0
      %427 = vdwg.mxu0
      %v428 = vlaneseq
      %v429 = vshrl.u32 %v428, 7
      %v430 = vrot.slane %v390, 7
      %v431 = vrot.slane %v395, 7
      %v432 = vrot.slane %v400, 7
      %v433 = vrot.slane %v405, 7
      %v434 = vrot.slane %v410, 7
      %v435 = vrot.slane %v415, 7
      %v436 = vrot.slane %v420, 7
      %v437 = vrot.slane %v425, 7
      %vm438 = vcmp.ge.s32.totalorder %v429, 1
      %v439 = vsel %vm438, 1, 0
      %vm440 = vcmp.eq.s32.totalorder %v439, 1
      %v441 = vsel %vm440, %v430, 0.0
      %v442 = vsel %vm440, %v431, 0.0
      %v443 = vsel %vm440, %v432, 0.0
      %v444 = vsel %vm440, %v433, 0.0
      %v445 = vsel %vm440, %v434, 0.0
      %v446 = vsel %vm440, %v435, 0.0
      %v447 = vsel %vm440, %v436, 0.0
      %v448 = vsel %vm440, %v437, 0.0
      %v449 = vrot.slane %v390, 1
      %v450 = vrot.slane %v395, 1
      %v451 = vrot.slane %v400, 1
      %v452 = vrot.slane %v405, 1
      %v453 = vrot.slane %v410, 1
      %v454 = vrot.slane %v415, 1
      %v455 = vrot.slane %v420, 1
      %v456 = vrot.slane %v425, 1
      %vm457 = vcmp.lt.s32.totalorder %v429, 7
      %v458 = vsel %vm457, 1, 0
      %vm459 = vcmp.eq.s32.totalorder %v458, 1
      %v460 = vsel %vm459, %v449, 0.0
      %v461 = vsel %vm459, %v450, 0.0
      %v462 = vsel %vm459, %v451, 0.0
      %v463 = vsel %vm459, %v452, 0.0
      %v464 = vsel %vm459, %v453, 0.0
      %v465 = vsel %vm459, %v454, 0.0
      %v466 = vsel %vm459, %v455, 0.0
      %v467 = vsel %vm459, %v456, 0.0
      %v468 = vld [vmem:[%s3] sm:$0xff]
      %v469 = vld [vmem:[%s3 + $0x8] sm:$0x1]
      %v470 = vlaneseq
      %v471 = vshrl.u32 %v470, 7
      %v472 = vsub.s32 0, %v471
      %v473 = vrot.slane %v468, %v472
      %v474 = vmul.f32 %v441, %v473
      %v475 = vmul.f32 %v442, %v473
      %v476 = vmul.f32 %v443, %v473
      %v477 = vmul.f32 %v444, %v473
      %v478 = vmul.f32 %v445, %v473
      %v479 = vmul.f32 %v446, %v473
      %v480 = vmul.f32 %v447, %v473
      %v481 = vlaneseq
      %v482 = vshrl.u32 %v481, 7
      %v483 = vsub.s32 1, %v482
      %v484 = vrot.slane %v468, %v483
      %v485 = vmul.f32 %v390, %v484
      %v486 = vmul.f32 %v395, %v484
      %v487 = vmul.f32 %v400, %v484
      %v488 = vmul.f32 %v405, %v484
      %v489 = vmul.f32 %v410, %v484
      %v490 = vmul.f32 %v415, %v484
      %v491 = vmul.f32 %v420, %v484
      %v492 = vadd.f32 %v474, %v485
      %v493 = vadd.f32 %v475, %v486
      %v494 = vadd.f32 %v476, %v487
      %v495 = vadd.f32 %v477, %v488
      %v496 = vadd.f32 %v478, %v489
      %v497 = vadd.f32 %v479, %v490
      %v498 = vadd.f32 %v480, %v491
      %v499 = vlaneseq
      %v500 = vshrl.u32 %v499, 7
      %v501 = vsub.s32 2, %v500
      %v502 = vrot.slane %v468, %v501
      %v503 = vmul.f32 %v460, %v502
      %v504 = vmul.f32 %v461, %v502
      %v505 = vmul.f32 %v462, %v502
      %v506 = vmul.f32 %v463, %v502
      %v507 = vmul.f32 %v464, %v502
      %v508 = vmul.f32 %v465, %v502
      %v509 = vmul.f32 %v466, %v502
      %v510 = vadd.f32 %v492, %v503
      %v511 = vadd.f32 %v493, %v504
      %v512 = vadd.f32 %v494, %v505
      %v513 = vadd.f32 %v495, %v506
      %v514 = vadd.f32 %v496, %v507
      %v515 = vadd.f32 %v497, %v508
      %v516 = vadd.f32 %v498, %v509
      %v517 = vadd.f32 %v510, 0.0
      %v518 = vadd.f32 %v511, 0.0
      %v519 = vadd.f32 %v512, 0.0
      %v520 = vadd.f32 %v513, 0.0
      %v521 = vadd.f32 %v514, 0.0
      %v522 = vadd.f32 %v515, 0.0
      %v523 = vadd.f32 %v516, 0.0
      %v524 = vlaneseq
      %v525 = vshrl.u32 %v524, 7
      %v526 = vsub.s32 3, %v525
      %v527 = vrot.slane %v468, %v526
      %v528 = vmul.f32 %v441, %v527
      %v529 = vmul.f32 %v442, %v527
      %v530 = vmul.f32 %v443, %v527
      %v531 = vmul.f32 %v444, %v527
      %v532 = vmul.f32 %v445, %v527
      %v533 = vmul.f32 %v446, %v527
      %v534 = vmul.f32 %v447, %v527
      %v535 = vmul.f32 %v448, %v527
      %v536 = vlaneseq
      %v537 = vshrl.u32 %v536, 7
      %v538 = vsub.s32 4, %v537
      %v539 = vrot.slane %v468, %v538
      %v540 = vmul.f32 %v390, %v539
      %v541 = vmul.f32 %v395, %v539
      %v542 = vmul.f32 %v400, %v539
      %v543 = vmul.f32 %v405, %v539
      %v544 = vmul.f32 %v410, %v539
      %v545 = vmul.f32 %v415, %v539
      %v546 = vmul.f32 %v420, %v539
      %v547 = vmul.f32 %v425, %v539
      %v548 = vadd.f32 %v528, %v540
      %v549 = vadd.f32 %v529, %v541
      %v550 = vadd.f32 %v530, %v542
      %v551 = vadd.f32 %v531, %v543
      %v552 = vadd.f32 %v532, %v544
      %v553 = vadd.f32 %v533, %v545
      %v554 = vadd.f32 %v534, %v546
      %v555 = vadd.f32 %v535, %v547
      %v556 = vlaneseq
      %v557 = vshrl.u32 %v556, 7
      %v558 = vsub.s32 5, %v557
      %v559 = vrot.slane %v468, %v558
      %v560 = vmul.f32 %v460, %v559
      %v561 = vmul.f32 %v461, %v559
      %v562 = vmul.f32 %v462, %v559
      %v563 = vmul.f32 %v463, %v559
      %v564 = vmul.f32 %v464, %v559
      %v565 = vmul.f32 %v465, %v559
      %v566 = vmul.f32 %v466, %v559
      %v567 = vmul.f32 %v467, %v559
      %v568 = vadd.f32 %v548, %v560
      %v569 = vadd.f32 %v549, %v561
      %v570 = vadd.f32 %v550, %v562
      %v571 = vadd.f32 %v551, %v563
      %v572 = vadd.f32 %v552, %v564
      %v573 = vadd.f32 %v553, %v565
      %v574 = vadd.f32 %v554, %v566
      %v575 = vadd.f32 %v555, %v567
      %v576 = vadd.f32 %v568, 0.0
      %v577 = vadd.f32 %v517, %v569
      %v578 = vadd.f32 %v518, %v570
      %v579 = vadd.f32 %v519, %v571
      %v580 = vadd.f32 %v520, %v572
      %v581 = vadd.f32 %v521, %v573
      %v582 = vadd.f32 %v522, %v574
      %v583 = vadd.f32 %v523, %v575
      %v584 = vlaneseq
      %v585 = vshrl.u32 %v584, 7
      %v586 = vsub.s32 6, %v585
      %v587 = vrot.slane %v468, %v586
      %v588 = vmul.f32 %v442, %v587
      %v589 = vmul.f32 %v443, %v587
      %v590 = vmul.f32 %v444, %v587
      %v591 = vmul.f32 %v445, %v587
      %v592 = vmul.f32 %v446, %v587
      %v593 = vmul.f32 %v447, %v587
      %v594 = vmul.f32 %v448, %v587
      %v595 = vlaneseq
      %v596 = vshrl.u32 %v595, 7
      %v597 = vsub.s32 7, %v596
      %v598 = vrot.slane %v468, %v597
      %v599 = vmul.f32 %v395, %v598
      %v600 = vmul.f32 %v400, %v598
      %v601 = vmul.f32 %v405, %v598
      %v602 = vmul.f32 %v410, %v598
      %v603 = vmul.f32 %v415, %v598
      %v604 = vmul.f32 %v420, %v598
      %v605 = vmul.f32 %v425, %v598
      %v606 = vadd.f32 %v588, %v599
      %v607 = vadd.f32 %v589, %v600
      %v608 = vadd.f32 %v590, %v601
      %v609 = vadd.f32 %v591, %v602
      %v610 = vadd.f32 %v592, %v603
      %v611 = vadd.f32 %v593, %v604
      %v612 = vadd.f32 %v594, %v605
      %v613 = vlaneseq
      %v614 = vshrl.u32 %v613, 7
      %v615 = vsub.s32 0, %v614
      %v616 = vrot.slane %v469, %v615
      %v617 = vmul.f32 %v461, %v616
      %v618 = vmul.f32 %v462, %v616
      %v619 = vmul.f32 %v463, %v616
      %v620 = vmul.f32 %v464, %v616
      %v621 = vmul.f32 %v465, %v616
      %v622 = vmul.f32 %v466, %v616
      %v623 = vmul.f32 %v467, %v616
      %v624 = vadd.f32 %v606, %v617
      %v625 = vadd.f32 %v607, %v618
      %v626 = vadd.f32 %v608, %v619
      %v627 = vadd.f32 %v609, %v620
      %v628 = vadd.f32 %v610, %v621
      %v629 = vadd.f32 %v611, %v622
      %v630 = vadd.f32 %v612, %v623
      %v631 = vadd.f32 %v576, %v624
      %v632 = vadd.f32 %v577, %v625
      %v633 = vadd.f32 %v578, %v626
      %v634 = vadd.f32 %v579, %v627
      %v635 = vadd.f32 %v580, %v628
      %v636 = vadd.f32 %v581, %v629
      %v637 = vadd.f32 %v582, %v630
      %v638 = vadd.f32 %v583, 0.0
      %v639 = vld [vmem:[%s4] sm:$0x1]
      %v641 = vlaneseq
      %v642 = vshrl.u32 %v641, 7
      %v643 = vsub.s32 0, %v642
      %v644 = vrot.slane %v639, %v643
      %v646 = vadd.f32 %v631, %v644
      %v647 = vadd.f32 %v632, %v644
      %v648 = vadd.f32 %v633, %v644
      %v649 = vadd.f32 %v634, %v644
      %v650 = vadd.f32 %v635, %v644
      %v651 = vadd.f32 %v636, %v644
      %v652 = vadd.f32 %v637, %v644
      %v653 = vadd.f32 %v638, %v644
      %v654 = vmul.f32 %v646, 0.5
      %v655 = vmul.f32 %v647, 0.5
      %v656 = vmul.f32 %v648, 0.5
      %v657 = vmul.f32 %v649, 0.5
      %v658 = vmul.f32 %v650, 0.5
      %v659 = vmul.f32 %v651, 0.5
      %v660 = vmul.f32 %v652, 0.5
      %v661 = vmul.f32 %v653, 0.5
      %v662 = vmul.f32 %v646, 0.70710677
      %v663 = vmul.f32 %v647, 0.70710677
      %v664 = vmul.f32 %v648, 0.70710677
      %v665 = vmul.f32 %v649, 0.70710677
      %v666 = vmul.f32 %v650, 0.70710677
      %v667 = vmul.f32 %v651, 0.70710677
      %v668 = vmul.f32 %v652, 0.70710677
      %v669 = vmul.f32 %v653, 0.70710677
      %v670 = verf.f32.pop %v662
      %v671 = verf.f32.pop %v663
      %v672 = verf.f32.pop %v664
      %v673 = verf.f32.pop %v665
      %v674 = verf.f32.pop %v666
      %v675 = verf.f32.pop %v667
      %v676 = verf.f32.pop %v668
      %v677 = verf.f32.pop %v669
      %v678 = vadd.f32 %v670, 1.0
      %v679 = vadd.f32 %v671, 1.0
      %v680 = vadd.f32 %v672, 1.0
      %v681 = vadd.f32 %v673, 1.0
      %v682 = vadd.f32 %v674, 1.0
      %v683 = vadd.f32 %v675, 1.0
      %v684 = vadd.f32 %v676, 1.0
      %v685 = vadd.f32 %v677, 1.0
      %v686 = vmul.f32 %v654, %v678
      %v687 = vmul.f32 %v655, %v679
      %v688 = vmul.f32 %v656, %v680
      %v689 = vmul.f32 %v657, %v681
      %v690 = vmul.f32 %v658, %v682
      %v691 = vmul.f32 %v659, %v683
      %v692 = vmul.f32 %v660, %v684
      %v693 = vmul.f32 %v661, %v685
      %v694 = vld [vmem:[%s5] sm:$0xff]
      %v695 = vld [vmem:[%s5 + $0x8] sm:$0xff]
      %v696 = vld [vmem:[%s5 + $0x10] sm:$0xff]
      %v697 = vld [vmem:[%s5 + $0x18] sm:$0xff]
      %v698 = vld [vmem:[%s5 + $0x20] sm:$0xff]
      %v699 = vld [vmem:[%s5 + $0x28] sm:$0xff]
      %v700 = vld [vmem:[%s5 + $0x30] sm:$0xff]
      %v701 = vld [vmem:[%s5 + $0x38] sm:$0xff]
      %v702 = vld [vmem:[%s6] sm:$0x1]
      %v704 = vlaneseq
      %v705 = vshrl.u32 %v704, 7
      %v706 = vsub.s32 0, %v705
      %v707 = vrot.slane %v702, %v706
      %vm709 = vcmask 523264
      %v711 = vsel %vm709, %v686, 0
      %v714 = vsel %vm709, %v687, 0
      %v717 = vsel %vm709, %v688, 0
      %v720 = vsel %vm709, %v689, 0
      %v723 = vsel %vm709, %v690, 0
      %v726 = vsel %vm709, %v691, 0
      %v729 = vsel %vm709, %v692, 0
      %v732 = vsel %vm709, %v693, 0
      %734 = vmatprep.subr.mxu0 0.0
      %735 = vmatpush1.msra.mxu0 %v694
      %736 = vmatprep.subr.mxu0 0.0
      %737 = vmatpush1.msra.mxu0 %v695
      %738 = vmatprep.subr.mxu0 0.0
      %739 = vmatpush1.msra.mxu0 %v696
      %740 = vmatprep.subr.mxu0 0.0
      %741 = vmatpush1.msra.mxu0 %v697
      %742 = vmatprep.subr.mxu0 0.0
      %743 = vmatpush1.msra.mxu0 %v698
      %744 = vmatprep.subr.mxu0 0.0
      %745 = vmatpush1.msra.mxu0 %v699
      %746 = vmatprep.subr.mxu0 0.0
      %747 = vmatpush1.msra.mxu0 %v700
      %748 = vmatprep.subr.mxu0 0.0
      %749 = vmatpush1.msra.mxu0 %v701
      %750 = vmatprep.subr.mxu0 0.0
      %751 = vmatpush1.msra.mxu0 0.0
      %752 = vmatprep.subr.mxu0 0.0
      %753 = vmatpush1.msra.mxu0 0.0
      %754 = vmatprep.subr.mxu0 0.0
      %755 = vmatpush1.msra.mxu0 0.0
      %756 = vmatprep.subr.mxu0 0.0
      %757 = vmatpush1.msra.mxu0 0.0
      %758 = vmatprep.subr.mxu0 0.0
      %759 = vmatpush1.msra.mxu0 0.0
      %760 = vmatprep.subr.mxu0 0.0
      %761 = vmatpush1.msra.mxu0 0.0
      %762 = vmatprep.subr.mxu0 0.0
      %763 = vmatpush1.msra.mxu0 0.0
      %764 = vmatprep.subr.mxu0 0.0
      %765 = vmatpush1.msra.mxu0 0.0
      %766 = vmatprep.subr.mxu0 0.0
      %767 = vmatpush1.msra.mxu0 0.0
      %768 = vmatprep.subr.mxu0 0.0
      %769 = vmatpush1.msra.mxu0 0.0
      %770 = vmatprep.subr.mxu0 0.0
      %771 = vmatpush1.msra.mxu0 0.0
      %772 = vmatprep.subr.mxu0 0.0
      %773 = vmatpush1.msra.mxu0 0.0
      %774 = vmatprep.subr.mxu0 0.0
      %775 = vmatpush1.msra.mxu0 0.0
      %776 = vmatprep.subr.mxu0 0.0
      %777 = vmatpush1.msra.mxu0 0.0
      %778 = vmatprep.subr.mxu0 0.0
      %779 = vmatpush1.msra.mxu0 0.0
      %780 = vmatprep.subr.mxu0 0.0
      %781 = vmatpush1.msra.mxu0 0.0
      %782 = vmatprep.subr.mxu0 0.0
      %783 = vmatpush1.msra.mxu0 0.0
      %784 = vmatprep.subr.mxu0 0.0
      %785 = vmatpush1.msra.mxu0 0.0
      %786 = vmatprep.subr.mxu0 0.0
      %787 = vmatpush1.msra.mxu0 0.0
      %788 = vmatprep.subr.mxu0 0.0
      %789 = vmatpush1.msra.mxu0 0.0
      %790 = vmatprep.subr.mxu0 0.0
      %791 = vmatpush1.msra.mxu0 0.0
      %792 = vmatprep.subr.mxu0 0.0
      %793 = vmatpush1.msra.mxu0 0.0
      %794 = vmatprep.subr.mxu0 0.0
      %795 = vmatpush1.msra.mxu0 0.0
      %796 = vmatprep.subr.mxu0 0.0
      %797 = vmatpush1.msra.mxu0 0.0
      %798 = vmatprep.mubr.f32.mxu0 0.0
      %799 = vmatmul.mubr.f32.gmra.mrb[0].mxu0 %v711
      %v800 = vpop.f32.mrb[0].mxu0
      %v801 = vadd.f32 %v707, %v800
      %v802 = vpop.f32.mrb[0].mxu0
      %803 = vmatprep.mubr.f32.mxu0 0.0
      %804 = vmatmul.mubr.f32.gmra.mrb[0].mxu0 %v714
      %v805 = vpop.f32.mrb[0].mxu0
      %v806 = vadd.f32 %v707, %v805
      %v807 = vpop.f32.mrb[0].mxu0
      %808 = vmatprep.mubr.f32.mxu0 0.0
      %809 = vmatmul.mubr.f32.gmra.mrb[0].mxu0 %v717
      %v810 = vpop.f32.mrb[0].mxu0
      %v811 = vadd.f32 %v707, %v810
      %v812 = vpop.f32.mrb[0].mxu0
      %813 = vmatprep.mubr.f32.mxu0 0.0
      %814 = vmatmul.mubr.f32.gmra.mrb[0].mxu0 %v720
      %v815 = vpop.f32.mrb[0].mxu0
      %v816 = vadd.f32 %v707, %v815
      %v817 = vpop.f32.mrb[0].mxu0
      %818 = vmatprep.mubr.f32.mxu0 0.0
      %819 = vmatmul.mubr.f32.gmra.mrb[0].mxu0 %v723
      %v820 = vpop.f32.mrb[0].mxu0
      %v821 = vadd.f32 %v707, %v820
      %v822 = vpop.f32.mrb[0].mxu0
      %823 = vmatprep.mubr.f32.mxu0 0.0
      %824 = vmatmul.mubr.f32.gmra.mrb[0].mxu0 %v726
      %v825 = vpop.f32.mrb[0].mxu0
      %v826 = vadd.f32 %v707, %v825
      %v827 = vpop.f32.mrb[0].mxu0
      %828 = vmatprep.mubr.f32.mxu0 0.0
      %829 = vmatmul.mubr.f32.gmra.mrb[0].mxu0 %v729
      %v830 = vpop.f32.mrb[0].mxu0
      %v831 = vadd.f32 %v707, %v830
      %v832 = vpop.f32.mrb[0].mxu0
      %833 = vmatprep.mubr.f32.mxu0 0.0
      %834 = vmatmul.mubr.f32.gmra.mrb[0].mxu0 %v732
      %v835 = vpop.f32.mrb[0].mxu0
      %v836 = vadd.f32 %v707, %v835
      %v837 = vpop.f32.mrb[0].mxu0
      %838 = vdwg.mxu0
      %839 = vst.msk [vmem:[%s278] sm:$0xff] %vm298, %v801
      %840 = vst.msk [vmem:[%s278 + $0x8] sm:$0xff] %vm298, %v806
      %841 = vst.msk [vmem:[%s278 + $0x10] sm:$0xff] %vm298, %v811
      %842 = vst.msk [vmem:[%s278 + $0x18] sm:$0xff] %vm298, %v816
      %843 = vst.msk [vmem:[%s278 + $0x20] sm:$0xff] %vm298, %v821
      %844 = vst.msk [vmem:[%s278 + $0x28] sm:$0xff] %vm298, %v826
      %845 = vst.msk [vmem:[%s278 + $0x30] sm:$0xff] %vm298, %v831
      %846 = vst.msk [vmem:[%s278 + $0x38] sm:$0xff] %vm298, %v836
      %p847 = scmp.lt.s32.totalorder %s18, 1
      %s848 = scalar_select %p847, %s18, 1
      %s849 = smul.addr %s848, 8
      %s850 = smul.addr %s849, 8
      %s851 = scalar_lea.vmem %s7, %s850
      // Predicated region
      $region49: #{tpu_custom_call.1} parent=47 // pred_check
        %p852 = pneg %p188
      $region50: #{tpu_custom_call.1} parent=47 // pred_check_branch
        %854 = sbr.rel (%p852) target = $region52
      $region51: #{tpu_custom_call.1} parent=47 // pred_region
        _
      $region52: #{tpu_custom_call.1} parent=47 // pred_fallthru
        _
    $region48: #{tpu_custom_call.1} parent=5 // pred_fallthru
      _
    %p855 = scmp.le.s32.totalorder 2, %s13
    // Predicated region
    $region53: #{tpu_custom_call.1} parent=5 // pred_check
      %p856 = pneg %p855
    $region54: #{tpu_custom_call.1} parent=5 // pred_check_branch
      %858 = sbr.rel (%p856) target = $region56
    $region55: #{tpu_custom_call.1} parent=5 // pred_region
      %s859 = ssub.s32 %s13, 2
      // Predicated region
      $region57: #{tpu_custom_call.1} parent=55 // pred_check
        %p860 = pneg %p194
      $region58: #{tpu_custom_call.1} parent=55 // pred_check_branch
        %862 = sbr.rel (%p860) target = $region60
      $region59: #{tpu_custom_call.1} parent=55 // pred_region
        %p863 = scmp.lt.s32.totalorder %s19, 1
        %s864 = scalar_select %p863, %s19, 1
        %s865 = smul.addr %s864, 8
        %s866 = smul.addr %s865, 8
        %s867 = scalar_lea.vmem %s7, %s866
      $region60: #{tpu_custom_call.1} parent=55 // pred_fallthru
        _
    $region56: #{tpu_custom_call.1} parent=5 // pred_fallthru
      _
  $region6: #{tpu_custom_call.1} parent=0 // loop_footer
    %s17 = sadd.s32 1, %s13
  $region7: #{tpu_custom_call.1} parent=0 // loop_footer_branch
    %12 = sbr.rel target = $region3
  $region8: #{tpu_custom_call.1} parent=0 // loop_exit
    _

</llo_original>
